<compile_context>
chip_gen: v7x
topology: tpu7x:2x2x1
jax: 0.10.0
libtpu: 0.0.40
codegen_flags: <defaults>
</compile_context>

<pallas_src>
import functools

import jax
import jax.numpy as jnp
from jax.experimental import pallas as pl
from jax.experimental.pallas import tpu as pltpu


# ---------------------------------------------------------------------------
# Fused kernel: NB images (lane-packed) per grid step.
# ---------------------------------------------------------------------------
def _bottleneck_kernel(x_ref, w1_ref, b1_ref, w2_ref, b2_ref, w3_ref, b3_ref,
                       o_ref, col_ref, *, H, W, NB, planes):
    L = H * W
    NBL = NB * L
    x = x_ref[0, :, :].astype(jnp.float32)                      # (cin, NB*L)

    # ---- conv1 (1x1) + bn1 + relu -----------------------------------------
    h1 = jnp.dot(w1_ref[...], x, preferred_element_type=jnp.float32)
    h1 = jnp.maximum(h1 + b1_ref[...], 0.0)                     # (planes, NB*L)

    # ---- boundary masks (hoisted, one iota per step) ------------------------
    # g = global lane index; p = pixel index within an image; c = column index.
    g = jax.lax.broadcasted_iota(jnp.int32, (1, NBL), 1)
    c = g % W
    p = g % L
    m_left = c >= 1              # tap reads (w - 1): invalid at w == 0
    m_right = c <= W - 2         # tap reads (w + 1): invalid at w == W - 1
    m_up = p >= W                # tap reads (h - 1): invalid at h == 0
    m_down = p < L - W           # tap reads (h + 1): invalid at h == H - 1

    # ---- conv2 (3x3, pad=1, stride=1) as ONE im2col matmul -----------------
    # Each tap is a whole-slab lane rotation of h1 (pltpu.roll, XLU slot);
    # the masks also kill any wrap across image boundaries from lane packing.
    k = 0
    for dy in (-1, 0, 1):
        for dx in (-1, 0, 1):
            d = dy * W + dx
            # output[g] = h1[g + d]  (np.roll semantics: shift = -d mod NBL)
            t = h1 if d == 0 else pltpu.roll(h1, shift=(-d) % NBL, axis=1)
            m = None
            if dy == -1:
                m = m_up
            elif dy == 1:
                m = m_down
            if dx == -1:
                m = m_left if m is None else jnp.logical_and(m, m_left)
            elif dx == 1:
                m = m_right if m is None else jnp.logical_and(m, m_right)
            if m is not None:
                t = jnp.where(m, t, 0.0)
            col_ref[k * planes:(k + 1) * planes, :] = t
            k += 1

    h2 = jnp.dot(w2_ref[...], col_ref[...], preferred_element_type=jnp.float32)
    h2 = jnp.maximum(h2 + b2_ref[...], 0.0)                     # (planes, NB*L)

    # ---- conv3 (1x1) + bn3 + residual add + relu ----------------------------
    y = jnp.dot(w3_ref[...], h2, preferred_element_type=jnp.float32)
    o_ref[0, :, :] = jnp.maximum(y + b3_ref[...] + x, 0.0).astype(o_ref.dtype)


# ---------------------------------------------------------------------------
# Wrapper: fold BN into the convs, lane-pack images, launch the fused kernel.
# ---------------------------------------------------------------------------
def bottleneck_forward(x_nchw, params, *, eps=1e-5, num_steps=None):
    """Bottleneck forward (inference-mode BN). x is NCHW like PyTorch."""
    N, cin, H, W = x_nchw.shape
    w1, w2, w3 = params["w1"], params["w2"], params["w3"]      # OIHW
    planes = w1.shape[0]
    cout = w3.shape[0]
    # Residual add without a downsample layer requires inplanes == 2 * planes.
    assert cin == cout, (cin, cout)
    L = H * W

    # Grid = number of batch chunks.  Keep 2 parallel steps when possible so a
    # v7x chip (2 TCs) is fully used; a single step otherwise.
    if num_steps is None:
        num_steps = 2 if (N % 2 == 0 and N >= 2) else 1
    assert N % num_steps == 0, (N, num_steps)
    NB = N // num_steps
    NBL = NB * L

    def fold(gamma, beta, mean, var):
        scale = gamma * jax.lax.rsqrt(var + eps)
        return scale, beta - mean * scale

    s1, b1 = fold(*params["bn1"])
    s2, b2 = fold(*params["bn2"])
    s3, b3 = fold(*params["bn3"])

    # Fold the BN scale into the conv weights (per output channel == per row).
    w1f = (s1[:, None] * w1[:, :, 0, 0]).astype(jnp.float32)            # (planes, cin)
    w2f = s2[:, None, None, None] * w2                                  # (O, I, 3, 3)
    # im2col weight: row o, column (ky*3+kx)*planes + i  == w2f[o, i, ky, kx]
    w2mat = jnp.transpose(w2f, (0, 2, 3, 1)).reshape(planes, 9 * planes)
    w2mat = w2mat.astype(jnp.float32)
    w3f = (s3[:, None] * w3[:, :, 0, 0]).astype(jnp.float32)            # (cout, planes)
    b1c = b1.reshape(planes, 1).astype(jnp.float32)
    b2c = b2.reshape(planes, 1).astype(jnp.float32)
    b3c = b3.reshape(cout, 1).astype(jnp.float32)

    # Lane-pack NB images per step: (N, C, H, W) -> (steps, C, NB*H*W).
    x2d = jnp.transpose(x_nchw.reshape(num_steps, NB, cin, L),
                        (0, 2, 1, 3)).reshape(num_steps, cin, NBL)

    kernel = functools.partial(_bottleneck_kernel,
                               H=H, W=W, NB=NB, planes=planes)

    out = pl.pallas_call(
        kernel,
        out_shape=jax.ShapeDtypeStruct((num_steps, cout, NBL), x_nchw.dtype),
        grid=(num_steps,),
        in_specs=[
            pl.BlockSpec((1, cin, NBL), lambda s: (s, 0, 0)),
            pl.BlockSpec((planes, cin), lambda s: (0, 0)),
            pl.BlockSpec((planes, 1), lambda s: (0, 0)),
            pl.BlockSpec((planes, 9 * planes), lambda s: (0, 0)),
            pl.BlockSpec((planes, 1), lambda s: (0, 0)),
            pl.BlockSpec((cout, planes), lambda s: (0, 0)),
            pl.BlockSpec((cout, 1), lambda s: (0, 0)),
        ],
        out_specs=pl.BlockSpec((1, cout, NBL), lambda s: (s, 0, 0)),
        scratch_shapes=[pltpu.VMEM((9 * planes, NBL), jnp.float32)],   # im2col buffer
        compiler_params=pltpu.CompilerParams(
            dimension_semantics=("parallel",)),
    )(x2d, w1f, b1c, w2mat, b2c, w3f, b3c)

    # (steps, cout, NB*L) -> (N, cout, H, W)
    out = jnp.transpose(out.reshape(num_steps, cout, NB, L),
                        (0, 2, 1, 3)).reshape(N, cout, H, W)
    return out


# ---------------------------------------------------------------------------
# Pure-JAX reference (lax convolutions, unfolded BN) for correctness checking.
# ---------------------------------------------------------------------------
def bottleneck_reference(x_nchw, params, *, eps=1e-5):
    dn = ("NCHW", "OIHW", "NCHW")

    def bn(x, gamma, beta, mean, var):
        scale = gamma * jax.lax.rsqrt(var + eps)
        bias = beta - mean * scale
        return x * scale[None, :, None, None] + bias[None, :, None, None]

    out = jax.lax.conv_general_dilated(x_nchw, params["w1"], (1, 1), "SAME",
                                       dimension_numbers=dn)
    out = jnp.maximum(bn(out, *params["bn1"]), 0.0)
    out = jax.lax.conv_general_dilated(out, params["w2"], (1, 1), "SAME",
                                       dimension_numbers=dn)
    out = jnp.maximum(bn(out, *params["bn2"]), 0.0)
    out = jax.lax.conv_general_dilated(out, params["w3"], (1, 1), "SAME",
                                       dimension_numbers=dn)
    out = jnp.maximum(bn(out, *params["bn3"]) + x_nchw, 0.0)
    return out


# ---------------------------------------------------------------------------
# Deterministic parameter construction (PyTorch-style OIHW weights + BN stats)
# ---------------------------------------------------------------------------
def make_params(key, inplanes, planes):
    exp = 2 * planes  # expansion = 2
    keys = jax.random.split(key, 6)

    def bn_params(k, c):
        kg, kb, km, kv = jax.random.split(k, 4)
        gamma = 1.0 + 0.1 * jax.random.normal(kg, (c,), jnp.float32)
        beta = 0.1 * jax.random.normal(kb, (c,), jnp.float32)
        mean = 0.1 * jax.random.normal(km, (c,), jnp.float32)
        var = 0.5 + jnp.abs(jax.random.normal(kv, (c,), jnp.float32))
        return (gamma, beta, mean, var)

    return {
        "w1": 0.2 * jax.random.normal(keys[0], (planes, inplanes, 1, 1), jnp.float32),
        "w2": 0.2 * jax.random.normal(keys[1], (planes, planes, 3, 3), jnp.float32),
        "w3": 0.2 * jax.random.normal(keys[2], (exp, planes, 1, 1), jnp.float32),
        "bn1": bn_params(keys[3], planes),
        "bn2": bn_params(keys[4], planes),
        "bn3": bn_params(keys[5], exp),
    }


if __name__ == "__main__":
    # NOTE: residual add without downsample requires inplanes == planes * 2.
    inplanes, planes = 8, 4
    N, H, W = 2, 16, 16

    key = jax.random.PRNGKey(0)
    kx, kp = jax.random.split(key)
    x = jax.random.normal(kx, (N, inplanes, H, W), jnp.float32)   # NCHW like PyTorch
    params = make_params(kp, inplanes, planes)

    out = jax.block_until_ready(jax.jit(bottleneck_forward)(x, params))
    ref = bottleneck_reference(x, params)

    assert out.shape == (N, 2 * planes, H, W), out.shape
    max_err = float(jnp.max(jnp.abs(out - ref)))
    assert jnp.allclose(out, ref, atol=1e-4, rtol=1e-4), max_err

    print("KERNEL_OK")
</pallas_src>

<mosaic_0001>
module attributes {stable_mosaic.version = 11 : i64} {
  func.func @_bottleneck_kernel(%arg0: i32, %arg1: memref<1x8x256xf32, #tpu.memory_space<vmem>>, %arg2: memref<4x8xf32, #tpu.memory_space<vmem>>, %arg3: memref<4x1xf32, #tpu.memory_space<vmem>>, %arg4: memref<4x36xf32, #tpu.memory_space<vmem>>, %arg5: memref<4x1xf32, #tpu.memory_space<vmem>>, %arg6: memref<8x4xf32, #tpu.memory_space<vmem>>, %arg7: memref<8x1xf32, #tpu.memory_space<vmem>>, %arg8: memref<1x8x256xf32, #tpu.memory_space<vmem>>, %arg9: memref<36x256xf32, #tpu.memory_space<vmem>>) attributes {dimension_semantics = [#tpu.dimension_semantics<parallel>], iteration_bounds = array<i64: 2>, scalar_prefetch = 0 : i64, scratch_operands = 1 : i64, tpu.core_type = #tpu.core_type<tc>, window_params = [{transform_indices = @transform_0, window_bounds = array<i64: 1, 8, 256>}, {pipeline_mode = #tpu.pipeline_mode<synchronous>, transform_indices = @transform_1, window_bounds = array<i64: 4, 8>}, {pipeline_mode = #tpu.pipeline_mode<synchronous>, transform_indices = @transform_2, window_bounds = array<i64: 4, 1>}, {pipeline_mode = #tpu.pipeline_mode<synchronous>, transform_indices = @transform_3, window_bounds = array<i64: 4, 36>}, {pipeline_mode = #tpu.pipeline_mode<synchronous>, transform_indices = @transform_4, window_bounds = array<i64: 4, 1>}, {pipeline_mode = #tpu.pipeline_mode<synchronous>, transform_indices = @transform_5, window_bounds = array<i64: 8, 4>}, {pipeline_mode = #tpu.pipeline_mode<synchronous>, transform_indices = @transform_6, window_bounds = array<i64: 8, 1>}, {transform_indices = @transform_7, window_bounds = array<i64: 1, 8, 256>}]} {
    %c0 = arith.constant 0 : index
    %c0_0 = arith.constant 0 : index
    %c0_1 = arith.constant 0 : index
    %0 = vector.load %arg1[%c0, %c0_0, %c0_1] : memref<1x8x256xf32, #tpu.memory_space<vmem>>, vector<1x8x256xf32>
    %1 = vector.shape_cast %0 : vector<1x8x256xf32> to vector<8x256xf32>
    %c0_2 = arith.constant 0 : index
    %c0_3 = arith.constant 0 : index
    %2 = vector.load %arg2[%c0_2, %c0_3] : memref<4x8xf32, #tpu.memory_space<vmem>>, vector<4x8xf32>
    %cst = arith.constant dense<0.000000e+00> : vector<4x256xf32>
    %3 = tpu.matmul %2, %1, %cst {dimension_numbers = #tpu.dot_dimension_numbers<[1], [0], [0], [1], [0, 0, 1, 1], [], []>} : vector<4x8xf32>, vector<8x256xf32>, vector<4x256xf32> -> vector<4x256xf32>
    %c0_4 = arith.constant 0 : index
    %c0_5 = arith.constant 0 : index
    %4 = vector.load %arg3[%c0_4, %c0_5] : memref<4x1xf32, #tpu.memory_space<vmem>>, vector<4x1xf32>
    %5 = vector.broadcast %4 : vector<4x1xf32> to vector<4x256xf32>
    %6 = arith.addf %3, %5 : vector<4x256xf32>
    %cst_6 = arith.constant 0.000000e+00 : f32
    %7 = vector.broadcast %cst_6 : f32 to vector<4x256xf32>
    %8 = arith.maximumf %6, %7 : vector<4x256xf32>
    %9 = tpu.iota {dimensions = array<i32: 1>} : vector<1x256xi32>
    %c16_i32 = arith.constant 16 : i32
    %c0_i32 = arith.constant 0 : i32
    %10 = arith.cmpi eq, %c16_i32, %c0_i32 : i32
    %c1_i32 = arith.constant 1 : i32
    %11 = arith.select %10, %c1_i32, %c16_i32 : i32
    %12 = vector.broadcast %11 : i32 to vector<1x256xi32>
    %13 = arith.remsi %9, %12 : vector<1x256xi32>
    %c0_i32_7 = arith.constant 0 : i32
    %14 = vector.broadcast %c0_i32_7 : i32 to vector<1x256xi32>
    %15 = arith.cmpi ne, %13, %14 : vector<1x256xi32>
    %c0_i32_8 = arith.constant 0 : i32
    %16 = vector.broadcast %c0_i32_8 : i32 to vector<1x256xi32>
    %17 = arith.cmpi slt, %13, %16 : vector<1x256xi32>
    %c0_i32_9 = arith.constant 0 : i32
    %18 = arith.cmpi slt, %11, %c0_i32_9 : i32
    %19 = vector.broadcast %18 : i1 to vector<1x256xi1>
    %20 = vector.broadcast %19 : vector<1x256xi1> to vector<1x256xi1>
    %21 = arith.xori %17, %20 : vector<1x256xi1>
    %22 = arith.andi %21, %15 : vector<1x256xi1>
    %23 = vector.broadcast %11 : i32 to vector<1x256xi32>
    %24 = arith.addi %13, %23 : vector<1x256xi32>
    %25 = arith.select %22, %24, %13 : vector<1x256xi1>, vector<1x256xi32>
    %c256_i32 = arith.constant 256 : i32
    %c0_i32_10 = arith.constant 0 : i32
    %26 = arith.cmpi eq, %c256_i32, %c0_i32_10 : i32
    %c1_i32_11 = arith.constant 1 : i32
    %27 = arith.select %26, %c1_i32_11, %c256_i32 : i32
    %28 = vector.broadcast %27 : i32 to vector<1x256xi32>
    %29 = arith.remsi %9, %28 : vector<1x256xi32>
    %c0_i32_12 = arith.constant 0 : i32
    %30 = vector.broadcast %c0_i32_12 : i32 to vector<1x256xi32>
    %31 = arith.cmpi ne, %29, %30 : vector<1x256xi32>
    %c0_i32_13 = arith.constant 0 : i32
    %32 = vector.broadcast %c0_i32_13 : i32 to vector<1x256xi32>
    %33 = arith.cmpi slt, %29, %32 : vector<1x256xi32>
    %c0_i32_14 = arith.constant 0 : i32
    %34 = arith.cmpi slt, %27, %c0_i32_14 : i32
    %35 = vector.broadcast %34 : i1 to vector<1x256xi1>
    %36 = vector.broadcast %35 : vector<1x256xi1> to vector<1x256xi1>
    %37 = arith.xori %33, %36 : vector<1x256xi1>
    %38 = arith.andi %37, %31 : vector<1x256xi1>
    %39 = vector.broadcast %27 : i32 to vector<1x256xi32>
    %40 = arith.addi %29, %39 : vector<1x256xi32>
    %41 = arith.select %38, %40, %29 : vector<1x256xi1>, vector<1x256xi32>
    %c1_i32_15 = arith.constant 1 : i32
    %42 = vector.broadcast %c1_i32_15 : i32 to vector<1x256xi32>
    %43 = arith.cmpi sge, %25, %42 : vector<1x256xi32>
    %c14_i32 = arith.constant 14 : i32
    %44 = vector.broadcast %c14_i32 : i32 to vector<1x256xi32>
    %45 = arith.cmpi sle, %25, %44 : vector<1x256xi32>
    %c16_i32_16 = arith.constant 16 : i32
    %46 = vector.broadcast %c16_i32_16 : i32 to vector<1x256xi32>
    %47 = arith.cmpi sge, %41, %46 : vector<1x256xi32>
    %c240_i32 = arith.constant 240 : i32
    %48 = vector.broadcast %c240_i32 : i32 to vector<1x256xi32>
    %49 = arith.cmpi slt, %41, %48 : vector<1x256xi32>
    %c17_i32 = arith.constant 17 : i32
    %50 = tpu.dynamic_rotate %8 by %c17_i32 dim 1 : vector<4x256xf32>, i32 -> vector<4x256xf32>
    %51 = arith.andi %47, %43 : vector<1x256xi1>
    %cst_17 = arith.constant 0.000000e+00 : f32
    %52 = vector.shape_cast %51 : vector<1x256xi1> to vector<1x256xi1>
    %53 = vector.broadcast %52 : vector<1x256xi1> to vector<4x256xi1>
    %54 = vector.broadcast %cst_17 : f32 to vector<4x256xf32>
    %55 = arith.select %53, %50, %54 : vector<4x256xi1>, vector<4x256xf32>
    %c0_18 = arith.constant 0 : index
    %c0_19 = arith.constant 0 : index
    %56 = vector.load %arg9[%c0_18, %c0_19] : memref<36x256xf32, #tpu.memory_space<vmem>>, vector<4x256xf32>
    tpu.vector_store %arg9[%c0_18, %c0_19], %55 {strides = array<i32>} : memref<36x256xf32, #tpu.memory_space<vmem>>, vector<4x256xf32>,
    %c16_i32_20 = arith.constant 16 : i32
    %57 = tpu.dynamic_rotate %8 by %c16_i32_20 dim 1 : vector<4x256xf32>, i32 -> vector<4x256xf32>
    %cst_21 = arith.constant 0.000000e+00 : f32
    %58 = vector.shape_cast %47 : vector<1x256xi1> to vector<1x256xi1>
    %59 = vector.broadcast %58 : vector<1x256xi1> to vector<4x256xi1>
    %60 = vector.broadcast %cst_21 : f32 to vector<4x256xf32>
    %61 = arith.select %59, %57, %60 : vector<4x256xi1>, vector<4x256xf32>
    %c4 = arith.constant 4 : index
    %c0_22 = arith.constant 0 : index
    %62 = vector.load %arg9[%c4, %c0_22] : memref<36x256xf32, #tpu.memory_space<vmem>>, vector<4x256xf32>
    tpu.vector_store %arg9[%c4, %c0_22], %61 {strides = array<i32>} : memref<36x256xf32, #tpu.memory_space<vmem>>, vector<4x256xf32>,
    %c15_i32 = arith.constant 15 : i32
    %63 = tpu.dynamic_rotate %8 by %c15_i32 dim 1 : vector<4x256xf32>, i32 -> vector<4x256xf32>
    %64 = arith.andi %47, %45 : vector<1x256xi1>
    %cst_23 = arith.constant 0.000000e+00 : f32
    %65 = vector.shape_cast %64 : vector<1x256xi1> to vector<1x256xi1>
    %66 = vector.broadcast %65 : vector<1x256xi1> to vector<4x256xi1>
    %67 = vector.broadcast %cst_23 : f32 to vector<4x256xf32>
    %68 = arith.select %66, %63, %67 : vector<4x256xi1>, vector<4x256xf32>
    %c8 = arith.constant 8 : index
    %c0_24 = arith.constant 0 : index
    %69 = vector.load %arg9[%c8, %c0_24] : memref<36x256xf32, #tpu.memory_space<vmem>>, vector<4x256xf32>
    tpu.vector_store %arg9[%c8, %c0_24], %68 {strides = array<i32>} : memref<36x256xf32, #tpu.memory_space<vmem>>, vector<4x256xf32>,
    %c1_i32_25 = arith.constant 1 : i32
    %70 = tpu.dynamic_rotate %8 by %c1_i32_25 dim 1 : vector<4x256xf32>, i32 -> vector<4x256xf32>
    %cst_26 = arith.constant 0.000000e+00 : f32
    %71 = vector.shape_cast %43 : vector<1x256xi1> to vector<1x256xi1>
    %72 = vector.broadcast %71 : vector<1x256xi1> to vector<4x256xi1>
    %73 = vector.broadcast %cst_26 : f32 to vector<4x256xf32>
    %74 = arith.select %72, %70, %73 : vector<4x256xi1>, vector<4x256xf32>
    %c12 = arith.constant 12 : index
    %c0_27 = arith.constant 0 : index
    %75 = vector.load %arg9[%c12, %c0_27] : memref<36x256xf32, #tpu.memory_space<vmem>>, vector<4x256xf32>
    tpu.vector_store %arg9[%c12, %c0_27], %74 {strides = array<i32>} : memref<36x256xf32, #tpu.memory_space<vmem>>, vector<4x256xf32>,
    %c16 = arith.constant 16 : index
    %c0_28 = arith.constant 0 : index
    %76 = vector.load %arg9[%c16, %c0_28] : memref<36x256xf32, #tpu.memory_space<vmem>>, vector<4x256xf32>
    tpu.vector_store %arg9[%c16, %c0_28], %8 {strides = array<i32>} : memref<36x256xf32, #tpu.memory_space<vmem>>, vector<4x256xf32>,
    %c255_i32 = arith.constant 255 : i32
    %77 = tpu.dynamic_rotate %8 by %c255_i32 dim 1 : vector<4x256xf32>, i32 -> vector<4x256xf32>
    %cst_29 = arith.constant 0.000000e+00 : f32
    %78 = vector.shape_cast %45 : vector<1x256xi1> to vector<1x256xi1>
    %79 = vector.broadcast %78 : vector<1x256xi1> to vector<4x256xi1>
    %80 = vector.broadcast %cst_29 : f32 to vector<4x256xf32>
    %81 = arith.select %79, %77, %80 : vector<4x256xi1>, vector<4x256xf32>
    %c20 = arith.constant 20 : index
    %c0_30 = arith.constant 0 : index
    %82 = vector.load %arg9[%c20, %c0_30] : memref<36x256xf32, #tpu.memory_space<vmem>>, vector<4x256xf32>
    tpu.vector_store %arg9[%c20, %c0_30], %81 {strides = array<i32>} : memref<36x256xf32, #tpu.memory_space<vmem>>, vector<4x256xf32>,
    %c241_i32 = arith.constant 241 : i32
    %83 = tpu.dynamic_rotate %8 by %c241_i32 dim 1 : vector<4x256xf32>, i32 -> vector<4x256xf32>
    %84 = arith.andi %49, %43 : vector<1x256xi1>
    %cst_31 = arith.constant 0.000000e+00 : f32
    %85 = vector.shape_cast %84 : vector<1x256xi1> to vector<1x256xi1>
    %86 = vector.broadcast %85 : vector<1x256xi1> to vector<4x256xi1>
    %87 = vector.broadcast %cst_31 : f32 to vector<4x256xf32>
    %88 = arith.select %86, %83, %87 : vector<4x256xi1>, vector<4x256xf32>
    %c24 = arith.constant 24 : index
    %c0_32 = arith.constant 0 : index
    %89 = vector.load %arg9[%c24, %c0_32] : memref<36x256xf32, #tpu.memory_space<vmem>>, vector<4x256xf32>
    tpu.vector_store %arg9[%c24, %c0_32], %88 {strides = array<i32>} : memref<36x256xf32, #tpu.memory_space<vmem>>, vector<4x256xf32>,
    %c240_i32_33 = arith.constant 240 : i32
    %90 = tpu.dynamic_rotate %8 by %c240_i32_33 dim 1 : vector<4x256xf32>, i32 -> vector<4x256xf32>
    %cst_34 = arith.constant 0.000000e+00 : f32
    %91 = vector.shape_cast %49 : vector<1x256xi1> to vector<1x256xi1>
    %92 = vector.broadcast %91 : vector<1x256xi1> to vector<4x256xi1>
    %93 = vector.broadcast %cst_34 : f32 to vector<4x256xf32>
    %94 = arith.select %92, %90, %93 : vector<4x256xi1>, vector<4x256xf32>
    %c28 = arith.constant 28 : index
    %c0_35 = arith.constant 0 : index
    %95 = vector.load %arg9[%c28, %c0_35] : memref<36x256xf32, #tpu.memory_space<vmem>>, vector<4x256xf32>
    tpu.vector_store %arg9[%c28, %c0_35], %94 {strides = array<i32>} : memref<36x256xf32, #tpu.memory_space<vmem>>, vector<4x256xf32>,
    %c239_i32 = arith.constant 239 : i32
    %96 = tpu.dynamic_rotate %8 by %c239_i32 dim 1 : vector<4x256xf32>, i32 -> vector<4x256xf32>
    %97 = arith.andi %49, %45 : vector<1x256xi1>
    %cst_36 = arith.constant 0.000000e+00 : f32
    %98 = vector.shape_cast %97 : vector<1x256xi1> to vector<1x256xi1>
    %99 = vector.broadcast %98 : vector<1x256xi1> to vector<4x256xi1>
    %100 = vector.broadcast %cst_36 : f32 to vector<4x256xf32>
    %101 = arith.select %99, %96, %100 : vector<4x256xi1>, vector<4x256xf32>
    %c32 = arith.constant 32 : index
    %c0_37 = arith.constant 0 : index
    %102 = vector.load %arg9[%c32, %c0_37] : memref<36x256xf32, #tpu.memory_space<vmem>>, vector<4x256xf32>
    tpu.vector_store %arg9[%c32, %c0_37], %101 {strides = array<i32>} : memref<36x256xf32, #tpu.memory_space<vmem>>, vector<4x256xf32>,
    %c0_38 = arith.constant 0 : index
    %c0_39 = arith.constant 0 : index
    %103 = vector.load %arg4[%c0_38, %c0_39] : memref<4x36xf32, #tpu.memory_space<vmem>>, vector<4x36xf32>
    %c0_40 = arith.constant 0 : index
    %c0_41 = arith.constant 0 : index
    %104 = vector.load %arg9[%c0_40, %c0_41] : memref<36x256xf32, #tpu.memory_space<vmem>>, vector<36x256xf32>
    %cst_42 = arith.constant dense<0.000000e+00> : vector<4x256xf32>
    %105 = tpu.matmul %103, %104, %cst_42 {dimension_numbers = #tpu.dot_dimension_numbers<[1], [0], [0], [1], [0, 0, 1, 1], [], []>} : vector<4x36xf32>, vector<36x256xf32>, vector<4x256xf32> -> vector<4x256xf32>
    %c0_43 = arith.constant 0 : index
    %c0_44 = arith.constant 0 : index
    %106 = vector.load %arg5[%c0_43, %c0_44] : memref<4x1xf32, #tpu.memory_space<vmem>>, vector<4x1xf32>
    %107 = vector.broadcast %106 : vector<4x1xf32> to vector<4x256xf32>
    %108 = arith.addf %105, %107 : vector<4x256xf32>
    %cst_45 = arith.constant 0.000000e+00 : f32
    %109 = vector.broadcast %cst_45 : f32 to vector<4x256xf32>
    %110 = arith.maximumf %108, %109 : vector<4x256xf32>
    %c0_46 = arith.constant 0 : index
    %c0_47 = arith.constant 0 : index
    %111 = vector.load %arg6[%c0_46, %c0_47] : memref<8x4xf32, #tpu.memory_space<vmem>>, vector<8x4xf32>
    %cst_48 = arith.constant dense<0.000000e+00> : vector<8x256xf32>
    %112 = tpu.matmul %111, %110, %cst_48 {dimension_numbers = #tpu.dot_dimension_numbers<[1], [0], [0], [1], [0, 0, 1, 1], [], []>} : vector<8x4xf32>, vector<4x256xf32>, vector<8x256xf32> -> vector<8x256xf32>
    %c0_49 = arith.constant 0 : index
    %c0_50 = arith.constant 0 : index
    %113 = vector.load %arg7[%c0_49, %c0_50] : memref<8x1xf32, #tpu.memory_space<vmem>>, vector<8x1xf32>
    %114 = vector.broadcast %113 : vector<8x1xf32> to vector<8x256xf32>
    %115 = arith.addf %112, %114 : vector<8x256xf32>
    %116 = arith.addf %115, %1 : vector<8x256xf32>
    %cst_51 = arith.constant 0.000000e+00 : f32
    %117 = vector.broadcast %cst_51 : f32 to vector<8x256xf32>
    %118 = arith.maximumf %116, %117 : vector<8x256xf32>
    %c0_52 = arith.constant 0 : index
    %c0_53 = arith.constant 0 : index
    %c0_54 = arith.constant 0 : index
    %119 = vector.load %arg8[%c0_52, %c0_53, %c0_54] : memref<1x8x256xf32, #tpu.memory_space<vmem>>, vector<1x8x256xf32>
    %120 = vector.shape_cast %119 : vector<1x8x256xf32> to vector<8x256xf32>
    %121 = vector.shape_cast %118 : vector<8x256xf32> to vector<1x8x256xf32>
    tpu.vector_store %arg8[%c0_52, %c0_53, %c0_54], %121 {strides = array<i32>} : memref<1x8x256xf32, #tpu.memory_space<vmem>>, vector<1x8x256xf32>,
    return
  }
  func.func @transform_0(%arg0: i32) -> (i32, i32, i32) {
    %c0_i32 = arith.constant 0 : i32
    %c0_i32_0 = arith.constant 0 : i32
    %c0_i32_1 = arith.constant 0 : i32
    return %arg0, %c0_i32, %c0_i32_0 : i32, i32, i32
  }
  func.func @transform_1(%arg0: i32) -> (i32, i32) {
    %c0_i32 = arith.constant 0 : i32
    %c0_i32_0 = arith.constant 0 : i32
    %c0_i32_1 = arith.constant 0 : i32
    return %c0_i32, %c0_i32_0 : i32, i32
  }
  func.func @transform_2(%arg0: i32) -> (i32, i32) {
    %c0_i32 = arith.constant 0 : i32
    %c0_i32_0 = arith.constant 0 : i32
    %c0_i32_1 = arith.constant 0 : i32
    return %c0_i32, %c0_i32_0 : i32, i32
  }
  func.func @transform_3(%arg0: i32) -> (i32, i32) {
    %c0_i32 = arith.constant 0 : i32
    %c0_i32_0 = arith.constant 0 : i32
    %c0_i32_1 = arith.constant 0 : i32
    return %c0_i32, %c0_i32_0 : i32, i32
  }
  func.func @transform_4(%arg0: i32) -> (i32, i32) {
    %c0_i32 = arith.constant 0 : i32
    %c0_i32_0 = arith.constant 0 : i32
    %c0_i32_1 = arith.constant 0 : i32
    return %c0_i32, %c0_i32_0 : i32, i32
  }
  func.func @transform_5(%arg0: i32) -> (i32, i32) {
    %c0_i32 = arith.constant 0 : i32
    %c0_i32_0 = arith.constant 0 : i32
    %c0_i32_1 = arith.constant 0 : i32
    return %c0_i32, %c0_i32_0 : i32, i32
  }
  func.func @transform_6(%arg0: i32) -> (i32, i32) {
    %c0_i32 = arith.constant 0 : i32
    %c0_i32_0 = arith.constant 0 : i32
    %c0_i32_1 = arith.constant 0 : i32
    return %c0_i32, %c0_i32_0 : i32, i32
  }
  func.func @transform_7(%arg0: i32) -> (i32, i32, i32) {
    %c0_i32 = arith.constant 0 : i32
    %c0_i32_0 = arith.constant 0 : i32
    %c0_i32_1 = arith.constant 0 : i32
    return %arg0, %c0_i32, %c0_i32_0 : i32, i32, i32
  }
}

</mosaic_0001>

<llo_original>
// kernel: bottleneck_forward.1
$region0: #{bottleneck_forward.1}
  #allocation0 [shape = 'u32[]', space=smem, size = 0x4, offset = 0x4, fixed_abs, tag = 'smem constant byte address 0x4 - core index']
  #allocation1 [shape = 'u32[144,128]{1,0:T(1,128)}', space=vmem, size = 0x12000, scoped, tag = 'internal scratch']
  #allocation2 [shape = 'f32[36,256]{1,0:T(8,128)}', space=vmem, size = 0xa000, scoped, tag = 'scratch operand']
  %s0 = inlined_call_operand.vmem [shape: f32[2,8,256], index: 0, kind: input, shape index: {}]
  %s1 = inlined_call_operand.vmem [shape: f32[4,8], index: 1, kind: input, shape index: {}]
  %s2 = inlined_call_operand.vmem [shape: f32[4,1], index: 2, kind: input, shape index: {}]
  %s3 = inlined_call_operand.vmem [shape: f32[4,36], index: 3, kind: input, shape index: {}]
  %s4 = inlined_call_operand.vmem [shape: f32[4,1], index: 4, kind: input, shape index: {}]
  %s5 = inlined_call_operand.vmem [shape: f32[8,4], index: 5, kind: input, shape index: {}]
  %s6 = inlined_call_operand.vmem [shape: f32[8,1], index: 6, kind: input, shape index: {}]
  %s7 = inlined_call_operand.vmem [shape: f32[2,8,256], index: 7, kind: output, shape index: {}]
  %s8 = sld [smem:[#allocation0]]
  $region61: #{bottleneck_forward.1} parent=0
    _
  %s10 = ssub.s32 1, %s8
  %s11 = scalar_select 0, %s10, %s8
  loop: start=0, step=1, limit=4
  $region2: #{bottleneck_forward.1} parent=0 // loop_pre_header
    _
  $region3: #{bottleneck_forward.1} parent=0 // loop_header
    %s13 = sphi 0, %s17
    %p14 = scmp.ge.s32.totalorder %s13, 4
    %s23 = sphi 0, %s25
    %s26 = sphi 0, %s23
    %s27 = sphi 0, %s26
    %s43 = sphi 0, %s27
    %s47 = sphi 0, %s47
    %s49 = sphi 0, %s47
    %s50 = sphi 0, %s49
    %s64 = sphi 0, %s50
    %s68 = sphi 0, %s68
    %s70 = sphi 0, %s68
    %s71 = sphi 0, %s70
    %s85 = sphi 0, %s71
    %s89 = sphi 0, %s89
    %s91 = sphi 0, %s89
    %s92 = sphi 0, %s91
    %s106 = sphi 0, %s92
    %s110 = sphi 0, %s110
    %s112 = sphi 0, %s110
    %s113 = sphi 0, %s112
    %s127 = sphi 0, %s113
    %s131 = sphi 0, %s131
    %s133 = sphi 0, %s131
    %s134 = sphi 0, %s133
    %s148 = sphi 0, %s134
    %s152 = sphi 0, %s152
    %s154 = sphi 0, %s152
    %s155 = sphi 0, %s154
    %s169 = sphi 0, %s155
    %s175 = sphi 0, %s177
    %s178 = sphi 0, %s175
    %s179 = sphi 0, %s178
    %s195 = sphi 0, %s179
  $region4: #{bottleneck_forward.1} parent=0 // loop_header_branch
    %16 = sbr.rel (%p14) target = $region8
  $region5: #{bottleneck_forward.1} parent=0 // loop_body
    %s18 = ssub.s32 %s13, 1
    %s19 = ssub.s32 %s13, 2
    %s20 = sadd.s32 %s13, 1
    %s21 = ssub.s32 %s13, %s20
    %p22 = scmp.eq.s32.totalorder %s21, 0
    %s24 = sadd.s32 %s23, 1
    %s25 = scalar_select %p22, %s23, %s24
    %p28 = pneg %p22
    %p29 = scmp.eq.s32.totalorder %s13, 1
    %p30 = por %p28, %p29
    %p31 = scmp.ne.s32.totalorder %s23, %s26
    %p32 = scmp.eq.s32.totalorder %s13, 0
    %p33 = por %p31, %p32
    %p34 = scmp.ne.s32.totalorder %s23, %s26
    %p35 = scmp.eq.s32.totalorder %s18, 1
    %p36 = por %p34, %p35
    %p37 = scmp.ne.s32.totalorder %s26, %s27
    %p38 = scmp.eq.s32.totalorder %s18, 0
    %p39 = por %p37, %p38
    %p40 = scmp.ne.s32.totalorder %s26, %s27
    %p41 = scmp.eq.s32.totalorder %s19, 1
    %p42 = por %p40, %p41
    %p44 = scmp.ne.s32.totalorder %s27, %s43
    %p45 = scmp.eq.s32.totalorder %s19, 0
    %p46 = por %p44, %p45
    %s48 = sadd.s32 %s47, 1
    %p51 = scmp.eq.s32.totalorder %s13, 1
    %p52 = scmp.ne.s32.totalorder %s47, %s49
    %p53 = scmp.eq.s32.totalorder %s13, 0
    %p54 = por %p52, %p53
    %p55 = scmp.ne.s32.totalorder %s47, %s49
    %p56 = scmp.eq.s32.totalorder %s18, 1
    %p57 = por %p55, %p56
    %p58 = scmp.ne.s32.totalorder %s49, %s50
    %p59 = scmp.eq.s32.totalorder %s18, 0
    %p60 = por %p58, %p59
    %p61 = scmp.ne.s32.totalorder %s49, %s50
    %p62 = scmp.eq.s32.totalorder %s19, 1
    %p63 = por %p61, %p62
    %p65 = scmp.ne.s32.totalorder %s50, %s64
    %p66 = scmp.eq.s32.totalorder %s19, 0
    %p67 = por %p65, %p66
    %s69 = sadd.s32 %s68, 1
    %p72 = scmp.eq.s32.totalorder %s13, 1
    %p73 = scmp.ne.s32.totalorder %s68, %s70
    %p74 = scmp.eq.s32.totalorder %s13, 0
    %p75 = por %p73, %p74
    %p76 = scmp.ne.s32.totalorder %s68, %s70
    %p77 = scmp.eq.s32.totalorder %s18, 1
    %p78 = por %p76, %p77
    %p79 = scmp.ne.s32.totalorder %s70, %s71
    %p80 = scmp.eq.s32.totalorder %s18, 0
    %p81 = por %p79, %p80
    %p82 = scmp.ne.s32.totalorder %s70, %s71
    %p83 = scmp.eq.s32.totalorder %s19, 1
    %p84 = por %p82, %p83
    %p86 = scmp.ne.s32.totalorder %s71, %s85
    %p87 = scmp.eq.s32.totalorder %s19, 0
    %p88 = por %p86, %p87
    %s90 = sadd.s32 %s89, 1
    %p93 = scmp.eq.s32.totalorder %s13, 1
    %p94 = scmp.ne.s32.totalorder %s89, %s91
    %p95 = scmp.eq.s32.totalorder %s13, 0
    %p96 = por %p94, %p95
    %p97 = scmp.ne.s32.totalorder %s89, %s91
    %p98 = scmp.eq.s32.totalorder %s18, 1
    %p99 = por %p97, %p98
    %p100 = scmp.ne.s32.totalorder %s91, %s92
    %p101 = scmp.eq.s32.totalorder %s18, 0
    %p102 = por %p100, %p101
    %p103 = scmp.ne.s32.totalorder %s91, %s92
    %p104 = scmp.eq.s32.totalorder %s19, 1
    %p105 = por %p103, %p104
    %p107 = scmp.ne.s32.totalorder %s92, %s106
    %p108 = scmp.eq.s32.totalorder %s19, 0
    %p109 = por %p107, %p108
    %s111 = sadd.s32 %s110, 1
    %p114 = scmp.eq.s32.totalorder %s13, 1
    %p115 = scmp.ne.s32.totalorder %s110, %s112
    %p116 = scmp.eq.s32.totalorder %s13, 0
    %p117 = por %p115, %p116
    %p118 = scmp.ne.s32.totalorder %s110, %s112
    %p119 = scmp.eq.s32.totalorder %s18, 1
    %p120 = por %p118, %p119
    %p121 = scmp.ne.s32.totalorder %s112, %s113
    %p122 = scmp.eq.s32.totalorder %s18, 0
    %p123 = por %p121, %p122
    %p124 = scmp.ne.s32.totalorder %s112, %s113
    %p125 = scmp.eq.s32.totalorder %s19, 1
    %p126 = por %p124, %p125
    %p128 = scmp.ne.s32.totalorder %s113, %s127
    %p129 = scmp.eq.s32.totalorder %s19, 0
    %p130 = por %p128, %p129
    %s132 = sadd.s32 %s131, 1
    %p135 = scmp.eq.s32.totalorder %s13, 1
    %p136 = scmp.ne.s32.totalorder %s131, %s133
    %p137 = scmp.eq.s32.totalorder %s13, 0
    %p138 = por %p136, %p137
    %p139 = scmp.ne.s32.totalorder %s131, %s133
    %p140 = scmp.eq.s32.totalorder %s18, 1
    %p141 = por %p139, %p140
    %p142 = scmp.ne.s32.totalorder %s133, %s134
    %p143 = scmp.eq.s32.totalorder %s18, 0
    %p144 = por %p142, %p143
    %p145 = scmp.ne.s32.totalorder %s133, %s134
    %p146 = scmp.eq.s32.totalorder %s19, 1
    %p147 = por %p145, %p146
    %p149 = scmp.ne.s32.totalorder %s134, %s148
    %p150 = scmp.eq.s32.totalorder %s19, 0
    %p151 = por %p149, %p150
    %s153 = sadd.s32 %s152, 1
    %p156 = scmp.eq.s32.totalorder %s13, 1
    %p157 = scmp.ne.s32.totalorder %s152, %s154
    %p158 = scmp.eq.s32.totalorder %s13, 0
    %p159 = por %p157, %p158
    %p160 = scmp.ne.s32.totalorder %s152, %s154
    %p161 = scmp.eq.s32.totalorder %s18, 1
    %p162 = por %p160, %p161
    %p163 = scmp.ne.s32.totalorder %s154, %s155
    %p164 = scmp.eq.s32.totalorder %s18, 0
    %p165 = por %p163, %p164
    %p166 = scmp.ne.s32.totalorder %s154, %s155
    %p167 = scmp.eq.s32.totalorder %s19, 1
    %p168 = por %p166, %p167
    %p170 = scmp.ne.s32.totalorder %s155, %s169
    %p171 = scmp.eq.s32.totalorder %s19, 0
    %p172 = por %p170, %p171
    %s173 = ssub.s32 %s13, %s20
    %p174 = scmp.eq.s32.totalorder %s173, 0
    %s176 = sadd.s32 %s175, 1
    %s177 = scalar_select %p174, %s175, %s176
    %p180 = pneg %p174
    %p181 = scmp.eq.s32.totalorder %s13, 1
    %p182 = por %p180, %p181
    %p183 = scmp.ne.s32.totalorder %s175, %s178
    %p184 = scmp.eq.s32.totalorder %s13, 0
    %p185 = por %p183, %p184
    %p186 = scmp.ne.s32.totalorder %s175, %s178
    %p187 = scmp.eq.s32.totalorder %s18, 1
    %p188 = por %p186, %p187
    %p189 = scmp.ne.s32.totalorder %s178, %s179
    %p190 = scmp.eq.s32.totalorder %s18, 0
    %p191 = por %p189, %p190
    %p192 = scmp.ne.s32.totalorder %s178, %s179
    %p193 = scmp.eq.s32.totalorder %s19, 1
    %p194 = por %p192, %p193
    %p196 = scmp.ne.s32.totalorder %s179, %s195
    %p197 = scmp.eq.s32.totalorder %s19, 0
    %p198 = por %p196, %p197
    %p199 = scmp.le.s32.totalorder 1, %s13
    %p200 = scmp.lt.s32.totalorder %s13, 3
    %p201 = pnand %p199, %p200
    %p202 = pneg %p201
    // Predicated region
    $region9: #{bottleneck_forward.1} parent=5 // pred_check
      _
    $region10: #{bottleneck_forward.1} parent=5 // pred_check_branch
      %204 = sbr.rel (%p201) target = $region12
    $region11: #{bottleneck_forward.1} parent=5 // pred_region
      %s205 = ssub.s32 %s13, 1
      // Predicated region
      $region13: #{bottleneck_forward.1} parent=11 // pred_check
        %p206 = pneg %p60
      $region14: #{bottleneck_forward.1} parent=11 // pred_check_branch
        %208 = sbr.rel (%p206) target = $region16
      $region15: #{bottleneck_forward.1} parent=11 // pred_region
        _
      $region16: #{bottleneck_forward.1} parent=11 // pred_fallthru
        _
      // Predicated region
      $region17: #{bottleneck_forward.1} parent=11 // pred_check
        %p209 = pneg %p81
      $region18: #{bottleneck_forward.1} parent=11 // pred_check_branch
        %211 = sbr.rel (%p209) target = $region20
      $region19: #{bottleneck_forward.1} parent=11 // pred_region
        _
      $region20: #{bottleneck_forward.1} parent=11 // pred_fallthru
        _
      // Predicated region
      $region21: #{bottleneck_forward.1} parent=11 // pred_check
        %p212 = pneg %p102
      $region22: #{bottleneck_forward.1} parent=11 // pred_check_branch
        %214 = sbr.rel (%p212) target = $region24
      $region23: #{bottleneck_forward.1} parent=11 // pred_region
        _
      $region24: #{bottleneck_forward.1} parent=11 // pred_fallthru
        _
      // Predicated region
      $region25: #{bottleneck_forward.1} parent=11 // pred_check
        %p215 = pneg %p123
      $region26: #{bottleneck_forward.1} parent=11 // pred_check_branch
        %217 = sbr.rel (%p215) target = $region28
      $region27: #{bottleneck_forward.1} parent=11 // pred_region
        _
      $region28: #{bottleneck_forward.1} parent=11 // pred_fallthru
        _
      // Predicated region
      $region29: #{bottleneck_forward.1} parent=11 // pred_check
        %p218 = pneg %p144
      $region30: #{bottleneck_forward.1} parent=11 // pred_check_branch
        %220 = sbr.rel (%p218) target = $region32
      $region31: #{bottleneck_forward.1} parent=11 // pred_region
        _
      $region32: #{bottleneck_forward.1} parent=11 // pred_fallthru
        _
      // Predicated region
      $region33: #{bottleneck_forward.1} parent=11 // pred_check
        %p221 = pneg %p165
      $region34: #{bottleneck_forward.1} parent=11 // pred_check_branch
        %223 = sbr.rel (%p221) target = $region36
      $region35: #{bottleneck_forward.1} parent=11 // pred_region
        _
      $region36: #{bottleneck_forward.1} parent=11 // pred_fallthru
        _
    $region12: #{bottleneck_forward.1} parent=5 // pred_fallthru
      _
    %p224 = scmp.lt.s32.totalorder %s13, 2
    // Predicated region
    $region37: #{bottleneck_forward.1} parent=5 // pred_check
      %p225 = pneg %p224
    $region38: #{bottleneck_forward.1} parent=5 // pred_check_branch
      %227 = sbr.rel (%p225) target = $region40
    $region39: #{bottleneck_forward.1} parent=5 // pred_region
      // Predicated region
      $region41: #{bottleneck_forward.1} parent=39 // pred_check
        %p228 = pneg %p33
      $region42: #{bottleneck_forward.1} parent=39 // pred_check_branch
        %230 = sbr.rel (%p228) target = $region44
      $region43: #{bottleneck_forward.1} parent=39 // pred_region
        %p231 = scmp.lt.s32.totalorder %s13, 1
        %s232 = scalar_select %p231, %s13, 1
        %s233 = smul.addr %s232, 2
        %s234 = smul.addr %s233, 8
        %s235 = scalar_lea.vmem %s0, %s234
      $region44: #{bottleneck_forward.1} parent=39 // pred_fallthru
        _
    $region40: #{bottleneck_forward.1} parent=5 // pred_fallthru
      _
    %p236 = scmp.le.s32.totalorder 1, %s13
    %p237 = scmp.lt.s32.totalorder %s13, 3
    %p238 = pnand %p236, %p237
    %p239 = pneg %p238
    // Predicated region
    $region45: #{bottleneck_forward.1} parent=5 // pred_check
      _
    $region46: #{bottleneck_forward.1} parent=5 // pred_check_branch
      %241 = sbr.rel (%p238) target = $region48
    $region47: #{bottleneck_forward.1} parent=5 // pred_region
      %s242 = ssub.s32 %s13, 1
      %p243 = scmp.lt.s32.totalorder %s18, 1
      %s244 = scalar_select %p243, %s18, 1
      %s245 = smul.addr %s244, 2
      %s246 = smul.addr %s245, 8
      %s247 = scalar_lea.vmem %s0, %s246
      %p248 = pneg %p39
      %p249 = pneg %p36
      %p250 = pneg %p60
      %p251 = pneg %p57
      %p252 = pneg %p81
      %p253 = pneg %p78
      %p254 = pneg %p102
      %p255 = pneg %p99
      %p256 = pneg %p123
      %p257 = pneg %p120
      %p258 = pneg %p144
      %p259 = pneg %p141
      %p260 = pneg %p165
      %p261 = pneg %p162
      %p262 = pneg %p191
      %p263 = pneg %p188
      %p264 = scmp.lt.s32.totalorder %s18, 1
      %s265 = scalar_select %p264, %s18, 1
      %s266 = smul.addr %s265, 2
      %s267 = smul.addr %s266, 8
      %s268 = scalar_lea.vmem %s7, %s267
      %p269 = scmp.lt.s32.totalorder %s18, 1
      %s270 = scalar_select %p269, %s18, 1
      %s271 = smul.addr %s270, 2
      %s272 = smul.addr %s271, 8
      %s273 = scalar_lea.vmem %s0, %s272
      %p274 = scmp.lt.s32.totalorder %s18, 1
      %s275 = scalar_select %p274, %s18, 1
      %s276 = smul.addr %s275, 2
      %s277 = smul.addr %s276, 8
      %s278 = scalar_lea.vmem %s7, %s277
      %v279 = vld [vmem:[%s273] sm:$0xff]
      %v280 = vld [vmem:[%s273 + $0x8] sm:$0xff]
      %v281 = vld [vmem:[%s1] sm:$0xf]
      %v282 = vld [vmem:[%s2] sm:$0xf]
      %284 = vset.pattern.permute.xlu0 0
      %285 = vperm.xlu0 %284, %v282
      %v286 = vpop.permute.xlu0 %285
      %vm288 = vcmask 64512
      %v290 = vsel %vm288, %v281, 0
      %292 = vmatprep.subr.mxu0 %v280
      %293 = vmatpush1.msra.mxu0 %v279
      %294 = vmatprep.subr.mxu0 0.0
      %295 = vmatpush1.msra.mxu0 0.0
      %296 = vmatprep.subr.mxu0 0.0
      %297 = vmatpush1.msra.mxu0 0.0
      %298 = vmatprep.subr.mxu0 0.0
      %299 = vmatpush1.msra.mxu0 0.0
      %300 = vmatprep.subr.mxu0 0.0
      %301 = vmatpush1.msra.mxu0 0.0
      %302 = vmatprep.subr.mxu0 0.0
      %303 = vmatpush1.msra.mxu0 0.0
      %304 = vmatprep.subr.mxu0 0.0
      %305 = vmatpush1.msra.mxu0 0.0
      %306 = vmatprep.subr.mxu0 0.0
      %307 = vmatpush1.msra.mxu0 0.0
      %308 = vmatprep.subr.mxu0 0.0
      %309 = vmatpush1.msra.mxu0 0.0
      %310 = vmatprep.subr.mxu0 0.0
      %311 = vmatpush1.msra.mxu0 0.0
      %312 = vmatprep.subr.mxu0 0.0
      %313 = vmatpush1.msra.mxu0 0.0
      %314 = vmatprep.subr.mxu0 0.0
      %315 = vmatpush1.msra.mxu0 0.0
      %316 = vmatprep.subr.mxu0 0.0
      %317 = vmatpush1.msra.mxu0 0.0
      %318 = vmatprep.subr.mxu0 0.0
      %319 = vmatpush1.msra.mxu0 0.0
      %320 = vmatprep.subr.mxu0 0.0
      %321 = vmatpush1.msra.mxu0 0.0
      %322 = vmatprep.subr.mxu0 0.0
      %323 = vmatpush1.msra.mxu0 0.0
      %324 = vmatprep.subr.mxu0 0.0
      %325 = vmatpush1.msra.mxu0 0.0
      %326 = vmatprep.subr.mxu0 0.0
      %327 = vmatpush1.msra.mxu0 0.0
      %328 = vmatprep.subr.mxu0 0.0
      %329 = vmatpush1.msra.mxu0 0.0
      %330 = vmatprep.subr.mxu0 0.0
      %331 = vmatpush1.msra.mxu0 0.0
      %332 = vmatprep.subr.mxu0 0.0
      %333 = vmatpush1.msra.mxu0 0.0
      %334 = vmatprep.subr.mxu0 0.0
      %335 = vmatpush1.msra.mxu0 0.0
      %336 = vmatprep.subr.mxu0 0.0
      %337 = vmatpush1.msra.mxu0 0.0
      %338 = vmatprep.subr.mxu0 0.0
      %339 = vmatpush1.msra.mxu0 0.0
      %340 = vmatprep.subr.mxu0 0.0
      %341 = vmatpush1.msra.mxu0 0.0
      %342 = vmatprep.subr.mxu0 0.0
      %343 = vmatpush1.msra.mxu0 0.0
      %344 = vmatprep.subr.mxu0 0.0
      %345 = vmatpush1.msra.mxu0 0.0
      %346 = vmatprep.subr.mxu0 0.0
      %347 = vmatpush1.msra.mxu0 0.0
      %348 = vmatprep.subr.mxu0 0.0
      %349 = vmatpush1.msra.mxu0 0.0
      %350 = vmatprep.subr.mxu0 0.0
      %351 = vmatpush1.msra.mxu0 0.0
      %352 = vmatprep.subr.mxu0 0.0
      %353 = vmatpush1.msra.mxu0 0.0
      %354 = vmatprep.subr.mxu0 0.0
      %355 = vmatpush1.msra.mxu0 0.0
      %356 = vmatprep.mubr.f32.mxu0 0.0
      %357 = vmatmul.mubr.f32.gmra.mrb[0].mxu0 %v290
      %v358 = vpop.f32.mrb[0].mxu0
      %v359 = vadd.f32 %v286, %v358
      %v360 = vpop.f32.mrb[0].mxu0
      %v361 = vadd.f32 %v286, %v360
      %362 = vdwg.mxu0
      %v363 = vmax.f32 %v359, 0.0
      %v364 = vmax.f32 %v361, 0.0
      %v365 = vlaneseq
      %v366 = vand.u32 %v365, 127
      %v367 = vadd.s32 %v366, 128
      %vm368 = vcmp.lt.s32.totalorder %v366, 0
      %v369 = vsub.s32 0, %v366
      %v370 = vsel %vm368, %v369, %v366
      %v371 = vshrl.u32 %v370, 4
      %v372 = vand.u32 %v370, 15
      %v373 = vsub.s32 0, %v372
      %v374 = vsel %vm368, %v373, %v372
      %vm375 = vcmp.lt.s32.totalorder %v367, 0
      %v376 = vsub.s32 0, %v367
      %v377 = vsel %vm375, %v376, %v367
      %v378 = vshrl.u32 %v377, 4
      %v379 = vand.u32 %v377, 15
      %v380 = vsub.s32 0, %v379
      %v381 = vsel %vm375, %v380, %v379
      %vm382 = vcmp.ne.s32.totalorder %v374, 0
      %vm383 = vcmp.ne.s32.totalorder %v381, 0
      %vm384 = vcmp.lt.s32.totalorder %v374, 0
      %vm385 = vcmp.lt.s32.totalorder %v381, 0
      %vm386 = vmand %vm384, %vm382
      %vm387 = vmand %vm385, %vm383
      %v388 = vadd.s32 %v374, 16
      %v389 = vadd.s32 %v381, 16
      %v390 = vsel %vm386, %v388, %v374
      %v391 = vsel %vm387, %v389, %v381
      %vm392 = vcmp.lt.s32.totalorder %v366, 0
      %v393 = vsub.s32 0, %v366
      %v394 = vsel %vm392, %v393, %v366
      %v395 = vshrl.u32 %v394, 8
      %v396 = vand.u32 %v394, 255
      %v397 = vsub.s32 0, %v396
      %v398 = vsel %vm392, %v397, %v396
      %vm399 = vcmp.lt.s32.totalorder %v367, 0
      %v400 = vsub.s32 0, %v367
      %v401 = vsel %vm399, %v400, %v367
      %v402 = vshrl.u32 %v401, 8
      %v403 = vand.u32 %v401, 255
      %v404 = vsub.s32 0, %v403
      %v405 = vsel %vm399, %v404, %v403
      %vm406 = vcmp.ne.s32.totalorder %v398, 0
      %vm407 = vcmp.ne.s32.totalorder %v405, 0
      %vm408 = vcmp.lt.s32.totalorder %v398, 0
      %vm409 = vcmp.lt.s32.totalorder %v405, 0
      %vm410 = vmand %vm408, %vm406
      %vm411 = vmand %vm409, %vm407
      %v412 = vadd.s32 %v398, 256
      %v413 = vadd.s32 %v405, 256
      %v414 = vsel %vm410, %v412, %v398
      %v415 = vsel %vm411, %v413, %v405
      %vm416 = vcmp.ge.s32.totalorder %v390, 1
      %vm417 = vcmp.ge.s32.totalorder %v391, 1
      %vm418 = vcmp.le.s32.totalorder %v390, 14
      %vm419 = vcmp.le.s32.totalorder %v391, 14
      %vm420 = vcmp.ge.s32.totalorder %v414, 16
      %vm421 = vcmp.ge.s32.totalorder %v415, 16
      %vm422 = vcmp.lt.s32.totalorder %v414, 240
      %vm423 = vcmp.lt.s32.totalorder %v415, 240
      %424 = vrot.lane.b32.xlu0 %v363, 17
      %v425 = vpop.permute.xlu0 %424
      %426 = vrot.lane.b32.xlu0 %v364, 17
      %v427 = vpop.permute.xlu0 %426
      %vm428 = vcmp.lt.s32.totalorder %v366, 17
      %v429 = vsel %vm428, %v425, %v427
      %v430 = vsel %vm428, %v427, %v425
      %vm431 = vmand %vm420, %vm416
      %vm432 = vmand %vm421, %vm417
      %v433 = vsel %vm431, 1, 0
      %v434 = vsel %vm432, 1, 0
      %vm435 = vcmp.eq.s32.totalorder %v433, 1
      %vm436 = vcmp.eq.s32.totalorder %v434, 1
      %v437 = vsel %vm435, %v430, 0.0
      %v438 = vsel %vm436, %v429, 0.0
      %439 = vst [vmem:[#allocation2] sm:$0xf] %v437
      %440 = vst [vmem:[#allocation2 + $0x8] sm:$0xf] %v438
      %441 = vrot.lane.b32.xlu0 %v363, 16
      %v442 = vpop.permute.xlu0 %441
      %443 = vrot.lane.b32.xlu0 %v364, 16
      %v444 = vpop.permute.xlu0 %443
      %vm445 = vcmp.lt.s32.totalorder %v366, 16
      %v446 = vsel %vm445, %v442, %v444
      %v447 = vsel %vm445, %v444, %v442
      %v448 = vsel %vm420, 1, 0
      %v449 = vsel %vm421, 1, 0
      %vm450 = vcmp.eq.s32.totalorder %v448, 1
      %vm451 = vcmp.eq.s32.totalorder %v449, 1
      %v452 = vsel %vm450, %v447, 0.0
      %v453 = vsel %vm451, %v446, 0.0
      %v456 = vrot.slane %v452, 4
      %v457 = vrot.slane %v453, 4
      %460 = vst [vmem:[#allocation2] sm:$0xf0] %v456
      %461 = vst [vmem:[#allocation2 + $0x8] sm:$0xf0] %v457
      %462 = vrot.lane.b32.xlu0 %v363, 15
      %v463 = vpop.permute.xlu0 %462
      %464 = vrot.lane.b32.xlu0 %v364, 15
      %v465 = vpop.permute.xlu0 %464
      %vm466 = vcmp.lt.s32.totalorder %v366, 15
      %v467 = vsel %vm466, %v463, %v465
      %v468 = vsel %vm466, %v465, %v463
      %vm469 = vmand %vm420, %vm418
      %vm470 = vmand %vm421, %vm419
      %v471 = vsel %vm469, 1, 0
      %v472 = vsel %vm470, 1, 0
      %vm473 = vcmp.eq.s32.totalorder %v471, 1
      %vm474 = vcmp.eq.s32.totalorder %v472, 1
      %v475 = vsel %vm473, %v468, 0.0
      %v476 = vsel %vm474, %v467, 0.0
      %477 = vst [vmem:[#allocation2 + $0x10] sm:$0xf] %v475
      %478 = vst [vmem:[#allocation2 + $0x18] sm:$0xf] %v476
      %479 = vrot.lane.b32.xlu0 %v363, 1
      %v480 = vpop.permute.xlu0 %479
      %481 = vrot.lane.b32.xlu0 %v364, 1
      %v482 = vpop.permute.xlu0 %481
      %vm483 = vcmp.lt.s32.totalorder %v366, 1
      %v484 = vsel %vm483, %v480, %v482
      %v485 = vsel %vm483, %v482, %v480
      %v486 = vsel %vm416, 1, 0
      %v487 = vsel %vm417, 1, 0
      %vm488 = vcmp.eq.s32.totalorder %v486, 1
      %vm489 = vcmp.eq.s32.totalorder %v487, 1
      %v490 = vsel %vm488, %v485, 0.0
      %v491 = vsel %vm489, %v484, 0.0
      %v494 = vrot.slane %v490, 4
      %v495 = vrot.slane %v491, 4
      %498 = vst [vmem:[#allocation2 + $0x10] sm:$0xf0] %v494
      %499 = vst [vmem:[#allocation2 + $0x18] sm:$0xf0] %v495
      %500 = vst [vmem:[#allocation2 + $0x20] sm:$0xf] %v363
      %501 = vst [vmem:[#allocation2 + $0x28] sm:$0xf] %v364
      %502 = vrot.lane.b32.xlu0 %v363, 127
      %v503 = vpop.permute.xlu0 %502
      %504 = vrot.lane.b32.xlu0 %v364, 127
      %v505 = vpop.permute.xlu0 %504
      %vm506 = vcmp.lt.s32.totalorder %v366, 127
      %v507 = vsel %vm506, %v503, %v505
      %v508 = vsel %vm506, %v505, %v503
      %v509 = vsel %vm418, 1, 0
      %v510 = vsel %vm419, 1, 0
      %vm511 = vcmp.eq.s32.totalorder %v509, 1
      %vm512 = vcmp.eq.s32.totalorder %v510, 1
      %v513 = vsel %vm511, %v507, 0.0
      %v514 = vsel %vm512, %v508, 0.0
      %v517 = vrot.slane %v513, 4
      %v518 = vrot.slane %v514, 4
      %521 = vst [vmem:[#allocation2 + $0x20] sm:$0xf0] %v517
      %522 = vst [vmem:[#allocation2 + $0x28] sm:$0xf0] %v518
      %523 = vrot.lane.b32.xlu0 %v363, 113
      %v524 = vpop.permute.xlu0 %523
      %525 = vrot.lane.b32.xlu0 %v364, 113
      %v526 = vpop.permute.xlu0 %525
      %vm527 = vcmp.lt.s32.totalorder %v366, 113
      %v528 = vsel %vm527, %v524, %v526
      %v529 = vsel %vm527, %v526, %v524
      %vm530 = vmand %vm422, %vm416
      %vm531 = vmand %vm423, %vm417
      %v532 = vsel %vm530, 1, 0
      %v533 = vsel %vm531, 1, 0
      %vm534 = vcmp.eq.s32.totalorder %v532, 1
      %vm535 = vcmp.eq.s32.totalorder %v533, 1
      %v536 = vsel %vm534, %v528, 0.0
      %v537 = vsel %vm535, %v529, 0.0
      %538 = vst [vmem:[#allocation2 + $0x30] sm:$0xf] %v536
      %539 = vst [vmem:[#allocation2 + $0x38] sm:$0xf] %v537
      %540 = vrot.lane.b32.xlu0 %v363, 112
      %v541 = vpop.permute.xlu0 %540
      %542 = vrot.lane.b32.xlu0 %v364, 112
      %v543 = vpop.permute.xlu0 %542
      %vm544 = vcmp.lt.s32.totalorder %v366, 112
      %v545 = vsel %vm544, %v541, %v543
      %v546 = vsel %vm544, %v543, %v541
      %v547 = vsel %vm422, 1, 0
      %v548 = vsel %vm423, 1, 0
      %vm549 = vcmp.eq.s32.totalorder %v547, 1
      %vm550 = vcmp.eq.s32.totalorder %v548, 1
      %v551 = vsel %vm549, %v545, 0.0
      %v552 = vsel %vm550, %v546, 0.0
      %v555 = vrot.slane %v551, 4
      %v556 = vrot.slane %v552, 4
      %559 = vst [vmem:[#allocation2 + $0x30] sm:$0xf0] %v555
      %560 = vst [vmem:[#allocation2 + $0x38] sm:$0xf0] %v556
      %561 = vrot.lane.b32.xlu0 %v363, 111
      %v562 = vpop.permute.xlu0 %561
      %563 = vrot.lane.b32.xlu0 %v364, 111
      %v564 = vpop.permute.xlu0 %563
      %vm565 = vcmp.lt.s32.totalorder %v366, 111
      %v566 = vsel %vm565, %v562, %v564
      %v567 = vsel %vm565, %v564, %v562
      %vm568 = vmand %vm422, %vm418
      %vm569 = vmand %vm423, %vm419
      %v570 = vsel %vm568, 1, 0
      %v571 = vsel %vm569, 1, 0
      %vm572 = vcmp.eq.s32.totalorder %v570, 1
      %vm573 = vcmp.eq.s32.totalorder %v571, 1
      %v574 = vsel %vm572, %v566, 0.0
      %v575 = vsel %vm573, %v567, 0.0
      %576 = vst [vmem:[#allocation2 + $0x40] sm:$0xf] %v574
      %577 = vst [vmem:[#allocation2 + $0x48] sm:$0xf] %v575
      %v578 = vld [vmem:[%s3] sm:$0xf]
      %v579 = vld [vmem:[#allocation2] sm:$0xff]
      %v580 = vld [vmem:[#allocation2 + $0x8] sm:$0xff]
      %v581 = vld [vmem:[#allocation2 + $0x10] sm:$0xff]
      %v582 = vld [vmem:[#allocation2 + $0x18] sm:$0xff]
      %v583 = vld [vmem:[#allocation2 + $0x20] sm:$0xff]
      %v584 = vld [vmem:[#allocation2 + $0x28] sm:$0xff]
      %v585 = vld [vmem:[#allocation2 + $0x30] sm:$0xff]
      %v586 = vld [vmem:[#allocation2 + $0x38] sm:$0xff]
      %v587 = vld [vmem:[#allocation2 + $0x40] sm:$0xf]
      %v588 = vld [vmem:[#allocation2 + $0x48] sm:$0xf]
      %v589 = vld [vmem:[%s4] sm:$0xf]
      %591 = vset.pattern.permute.xlu0 0
      %592 = vperm.xlu0 %591, %v589
      %v593 = vpop.permute.xlu0 %592
      %vm595 = vcmask 293888
      %v597 = vsel %vm595, %v578, 0
      %vm599 = vcmask 1043456
      %v601 = vsel %vm599, %v587, 0
      %v604 = vsel %vm599, %v588, 0
      %606 = vmatprep.subr.mxu0 %v580
      %607 = vmatpush1.msra.mxu0 %v579
      %608 = vmatprep.subr.mxu0 %v582
      %609 = vmatpush1.msra.mxu0 %v581
      %610 = vmatprep.subr.mxu0 %v584
      %611 = vmatpush1.msra.mxu0 %v583
      %612 = vmatprep.subr.mxu0 %v586
      %613 = vmatpush1.msra.mxu0 %v585
      %614 = vmatprep.subr.mxu0 %v604
      %615 = vmatpush1.msra.mxu0 %v601
      %616 = vmatprep.subr.mxu0 0.0
      %617 = vmatpush1.msra.mxu0 0.0
      %618 = vmatprep.subr.mxu0 0.0
      %619 = vmatpush1.msra.mxu0 0.0
      %620 = vmatprep.subr.mxu0 0.0
      %621 = vmatpush1.msra.mxu0 0.0
      %622 = vmatprep.subr.mxu0 0.0
      %623 = vmatpush1.msra.mxu0 0.0
      %624 = vmatprep.subr.mxu0 0.0
      %625 = vmatpush1.msra.mxu0 0.0
      %626 = vmatprep.subr.mxu0 0.0
      %627 = vmatpush1.msra.mxu0 0.0
      %628 = vmatprep.subr.mxu0 0.0
      %629 = vmatpush1.msra.mxu0 0.0
      %630 = vmatprep.subr.mxu0 0.0
      %631 = vmatpush1.msra.mxu0 0.0
      %632 = vmatprep.subr.mxu0 0.0
      %633 = vmatpush1.msra.mxu0 0.0
      %634 = vmatprep.subr.mxu0 0.0
      %635 = vmatpush1.msra.mxu0 0.0
      %636 = vmatprep.subr.mxu0 0.0
      %637 = vmatpush1.msra.mxu0 0.0
      %638 = vmatprep.subr.mxu0 0.0
      %639 = vmatpush1.msra.mxu0 0.0
      %640 = vmatprep.subr.mxu0 0.0
      %641 = vmatpush1.msra.mxu0 0.0
      %642 = vmatprep.subr.mxu0 0.0
      %643 = vmatpush1.msra.mxu0 0.0
      %644 = vmatprep.subr.mxu0 0.0
      %645 = vmatpush1.msra.mxu0 0.0
      %646 = vmatprep.subr.mxu0 0.0
      %647 = vmatpush1.msra.mxu0 0.0
      %648 = vmatprep.subr.mxu0 0.0
      %649 = vmatpush1.msra.mxu0 0.0
      %650 = vmatprep.subr.mxu0 0.0
      %651 = vmatpush1.msra.mxu0 0.0
      %652 = vmatprep.subr.mxu0 0.0
      %653 = vmatpush1.msra.mxu0 0.0
      %654 = vmatprep.subr.mxu0 0.0
      %655 = vmatpush1.msra.mxu0 0.0
      %656 = vmatprep.subr.mxu0 0.0
      %657 = vmatpush1.msra.mxu0 0.0
      %658 = vmatprep.subr.mxu0 0.0
      %659 = vmatpush1.msra.mxu0 0.0
      %660 = vmatprep.subr.mxu0 0.0
      %661 = vmatpush1.msra.mxu0 0.0
      %662 = vmatprep.subr.mxu0 0.0
      %663 = vmatpush1.msra.mxu0 0.0
      %664 = vmatprep.subr.mxu0 0.0
      %665 = vmatpush1.msra.mxu0 0.0
      %666 = vmatprep.subr.mxu0 0.0
      %667 = vmatpush1.msra.mxu0 0.0
      %668 = vmatprep.subr.mxu0 0.0
      %669 = vmatpush1.msra.mxu0 0.0
      %670 = vmatprep.mubr.f32.mxu0 0.0
      %671 = vmatmul.mubr.f32.gmra.mrb[0].mxu0 %v597
      %v672 = vpop.f32.mrb[0].mxu0
      %v673 = vadd.f32 %v593, %v672
      %v674 = vpop.f32.mrb[0].mxu0
      %v675 = vadd.f32 %v593, %v674
      %676 = vdwg.mxu0
      %v677 = vmax.f32 %v673, 0.0
      %v678 = vmax.f32 %v675, 0.0
      %v679 = vld [vmem:[%s5] sm:$0xff]
      %v680 = vld [vmem:[%s6] sm:$0xff]
      %682 = vset.pattern.permute.xlu0 0
      %683 = vperm.xlu0 %682, %v680
      %v684 = vpop.permute.xlu0 %683
      %vm686 = vcmask 31744
      %v688 = vsel %vm686, %v679, 0
      %v691 = vsel %vm599, %v677, 0
      %v694 = vsel %vm599, %v678, 0
      %696 = vmatprep.subr.mxu0 %v694
      %697 = vmatpush1.msra.mxu0 %v691
      %698 = vmatprep.subr.mxu0 0.0
      %699 = vmatpush1.msra.mxu0 0.0
      %700 = vmatprep.subr.mxu0 0.0
      %701 = vmatpush1.msra.mxu0 0.0
      %702 = vmatprep.subr.mxu0 0.0
      %703 = vmatpush1.msra.mxu0 0.0
      %704 = vmatprep.subr.mxu0 0.0
      %705 = vmatpush1.msra.mxu0 0.0
      %706 = vmatprep.subr.mxu0 0.0
      %707 = vmatpush1.msra.mxu0 0.0
      %708 = vmatprep.subr.mxu0 0.0
      %709 = vmatpush1.msra.mxu0 0.0
      %710 = vmatprep.subr.mxu0 0.0
      %711 = vmatpush1.msra.mxu0 0.0
      %712 = vmatprep.subr.mxu0 0.0
      %713 = vmatpush1.msra.mxu0 0.0
      %714 = vmatprep.subr.mxu0 0.0
      %715 = vmatpush1.msra.mxu0 0.0
      %716 = vmatprep.subr.mxu0 0.0
      %717 = vmatpush1.msra.mxu0 0.0
      %718 = vmatprep.subr.mxu0 0.0
      %719 = vmatpush1.msra.mxu0 0.0
      %720 = vmatprep.subr.mxu0 0.0
      %721 = vmatpush1.msra.mxu0 0.0
      %722 = vmatprep.subr.mxu0 0.0
      %723 = vmatpush1.msra.mxu0 0.0
      %724 = vmatprep.subr.mxu0 0.0
      %725 = vmatpush1.msra.mxu0 0.0
      %726 = vmatprep.subr.mxu0 0.0
      %727 = vmatpush1.msra.mxu0 0.0
      %728 = vmatprep.subr.mxu0 0.0
      %729 = vmatpush1.msra.mxu0 0.0
      %730 = vmatprep.subr.mxu0 0.0
      %731 = vmatpush1.msra.mxu0 0.0
      %732 = vmatprep.subr.mxu0 0.0
      %733 = vmatpush1.msra.mxu0 0.0
      %734 = vmatprep.subr.mxu0 0.0
      %735 = vmatpush1.msra.mxu0 0.0
      %736 = vmatprep.subr.mxu0 0.0
      %737 = vmatpush1.msra.mxu0 0.0
      %738 = vmatprep.subr.mxu0 0.0
      %739 = vmatpush1.msra.mxu0 0.0
      %740 = vmatprep.subr.mxu0 0.0
      %741 = vmatpush1.msra.mxu0 0.0
      %742 = vmatprep.subr.mxu0 0.0
      %743 = vmatpush1.msra.mxu0 0.0
      %744 = vmatprep.subr.mxu0 0.0
      %745 = vmatpush1.msra.mxu0 0.0
      %746 = vmatprep.subr.mxu0 0.0
      %747 = vmatpush1.msra.mxu0 0.0
      %748 = vmatprep.subr.mxu0 0.0
      %749 = vmatpush1.msra.mxu0 0.0
      %750 = vmatprep.subr.mxu0 0.0
      %751 = vmatpush1.msra.mxu0 0.0
      %752 = vmatprep.subr.mxu0 0.0
      %753 = vmatpush1.msra.mxu0 0.0
      %754 = vmatprep.subr.mxu0 0.0
      %755 = vmatpush1.msra.mxu0 0.0
      %756 = vmatprep.subr.mxu0 0.0
      %757 = vmatpush1.msra.mxu0 0.0
      %758 = vmatprep.subr.mxu0 0.0
      %759 = vmatpush1.msra.mxu0 0.0
      %760 = vmatprep.mubr.f32.mxu0 0.0
      %761 = vmatmul.mubr.f32.gmra.mrb[0].mxu0 %v688
      %v762 = vpop.f32.mrb[0].mxu0
      %v763 = vadd.f32 %v684, %v762
      %v764 = vpop.f32.mrb[0].mxu0
      %v765 = vadd.f32 %v684, %v764
      %766 = vdwg.mxu0
      %v767 = vadd.f32 %v763, %v279
      %v768 = vadd.f32 %v765, %v280
      %v769 = vmax.f32 %v767, 0.0
      %v770 = vmax.f32 %v768, 0.0
      %771 = vst [vmem:[%s278] sm:$0xff] %v769
      %772 = vst [vmem:[%s278 + $0x8] sm:$0xff] %v770
      %p773 = scmp.lt.s32.totalorder %s18, 1
      %s774 = scalar_select %p773, %s18, 1
      %s775 = smul.addr %s774, 2
      %s776 = smul.addr %s775, 8
      %s777 = scalar_lea.vmem %s7, %s776
      // Predicated region
      $region49: #{bottleneck_forward.1} parent=47 // pred_check
        %p778 = pneg %p188
      $region50: #{bottleneck_forward.1} parent=47 // pred_check_branch
        %780 = sbr.rel (%p778) target = $region52
      $region51: #{bottleneck_forward.1} parent=47 // pred_region
        _
      $region52: #{bottleneck_forward.1} parent=47 // pred_fallthru
        _
    $region48: #{bottleneck_forward.1} parent=5 // pred_fallthru
      _
    %p781 = scmp.le.s32.totalorder 2, %s13
    // Predicated region
    $region53: #{bottleneck_forward.1} parent=5 // pred_check
      %p782 = pneg %p781
    $region54: #{bottleneck_forward.1} parent=5 // pred_check_branch
      %784 = sbr.rel (%p782) target = $region56
    $region55: #{bottleneck_forward.1} parent=5 // pred_region
      %s785 = ssub.s32 %s13, 2
      // Predicated region
      $region57: #{bottleneck_forward.1} parent=55 // pred_check
        %p786 = pneg %p194
      $region58: #{bottleneck_forward.1} parent=55 // pred_check_branch
        %788 = sbr.rel (%p786) target = $region60
      $region59: #{bottleneck_forward.1} parent=55 // pred_region
        %p789 = scmp.lt.s32.totalorder %s19, 1
        %s790 = scalar_select %p789, %s19, 1
        %s791 = smul.addr %s790, 2
        %s792 = smul.addr %s791, 8
        %s793 = scalar_lea.vmem %s7, %s792
      $region60: #{bottleneck_forward.1} parent=55 // pred_fallthru
        _
    $region56: #{bottleneck_forward.1} parent=5 // pred_fallthru
      _
  $region6: #{bottleneck_forward.1} parent=0 // loop_footer
    %s17 = sadd.s32 1, %s13
  $region7: #{bottleneck_forward.1} parent=0 // loop_footer_branch
    %12 = sbr.rel target = $region3
  $region8: #{bottleneck_forward.1} parent=0 // loop_exit
    _

</llo_original>
